<compile_context>
chip_gen: v5e
topology: v5e:2x2
jax: 0.10.0
libtpu: 0.0.40
codegen_flags: <defaults>
</compile_context>

<pallas_src>
import functools

import jax
import jax.numpy as jnp
from jax.experimental import pallas as pl
from jax.experimental.pallas import tpu as pltpu


def _round_up(n, m):
    return ((n + m - 1) // m) * m


def _slab_layout(num_layers, d_in, hidden):
    """Static row layout of the packed parameter slab (lane width = 4*hidden)."""
    H = hidden
    lane_w = 4 * H
    order = [("w_ih0", d_in), ("w_hh0", H), ("b0", 1)]
    for l in range(1, num_layers):
        order += [(f"wcat{l}", 2 * H), (f"b{l}", 1)]
    # Head: w1 zero-padded to (H, lane_w); w2 zero-padded to (lane_w, lane_w).
    order += [("w1", H), ("b1", 1), ("w2", lane_w), ("b2", 1)]
    offsets = {}
    row = 0
    for name, nrows in order:
        offsets[name] = (row, nrows)
        row += _round_up(nrows, 8)           # keep every piece 8-row aligned
    return order, offsets, row, lane_w


# ----------------------------------------------------------------------------
# Fused kernel: all LSTM layers + MLP head, grid-less, fully VMEM-resident.
#   x_ref    : (T*Bp, D_in)  time-major, batch padded to Bp=8
#   slab_ref : (rows, 4H)    all parameters packed (static row offsets)
#   out_ref  : (Bp, 4H)      only [:B, :O] meaningful (sliced in XLA)
# ----------------------------------------------------------------------------
def _fused_lstm_mlp_kernel(x_ref, slab_ref, out_ref, *, num_layers, seq_len,
                           batch_pad, hidden, offsets):
    T, Bp, H = seq_len, batch_pad, hidden
    G = 4 * H

    def piece(name):
        off, nrows = offsets[name]
        return slab_ref[off:off + nrows, :]

    # ---- layer 0: hoisted input projection for ALL timesteps (one matmul,
    #      bias folded once) ------------------------------------------------
    x = x_ref[...]                                             # (T*Bp, D_in)
    w_ih0 = piece("w_ih0")                                     # (D_in, 4H)
    w_hh0 = piece("w_hh0")                                     # (H, 4H)
    b0 = piece("b0")                                           # (1, 4H)
    gx0 = jnp.dot(x, w_ih0, preferred_element_type=jnp.float32) + b0

    # Layers >= 1: concatenated [W_ih; W_hh] weights, biases hoisted/broadcast.
    w_cats = [piece(f"wcat{l}") for l in range(1, num_layers)]  # (2H, 4H)
    b_up = [jnp.broadcast_to(piece(f"b{l}"), (Bp, G))
            for l in range(1, num_layers)]

    def cell(gates, c):
        # Full-width nonlinearities: one tanh covers all three sigmoids
        # (sigmoid(x) = 0.5*tanh(0.5*x) + 0.5), one tanh covers g.
        sg = 0.5 * jnp.tanh(0.5 * gates) + 0.5                  # (Bp, 4H)
        tg = jnp.tanh(gates)                                    # (Bp, 4H)
        i_g = sg[:, 0 * H:1 * H]
        f_g = sg[:, 1 * H:2 * H]
        o_g = sg[:, 3 * H:4 * H]
        g_g = tg[:, 2 * H:3 * H]
        c_new = f_g * c + i_g * g_g
        h_new = o_g * jnp.tanh(c_new)
        return h_new, c_new

    hs = [jnp.zeros((Bp, H), jnp.float32) for _ in range(num_layers)]
    cs = [jnp.zeros((Bp, H), jnp.float32) for _ in range(num_layers)]

    # Fully unrolled wavefront: layer l step t only depends on layer l-1
    # step t and layer l step t-1 — the scheduler overlaps the recurrences.
    for t in range(T):
        gates0 = gx0[t * Bp:(t + 1) * Bp, :] + jnp.dot(
            hs[0], w_hh0, preferred_element_type=jnp.float32)
        hs[0], cs[0] = cell(gates0, cs[0])
        for l in range(1, num_layers):
            inp = jnp.concatenate([hs[l - 1], hs[l]], axis=1)   # (Bp, 2H)
            gates = jnp.dot(inp, w_cats[l - 1],
                            preferred_element_type=jnp.float32) + b_up[l - 1]
            hs[l], cs[l] = cell(gates, cs[l])

    # ---- MLP head on final hidden state of last layer (== lstm_out[:, -1]) --
    w1 = piece("w1")                                            # (H, 4H)
    b1 = piece("b1")                                            # (1, 4H)
    w2 = piece("w2")                                            # (4H, 4H)
    b2 = piece("b2")                                            # (1, 4H)
    z = jnp.maximum(
        jnp.dot(hs[-1], w1, preferred_element_type=jnp.float32) + b1, 0.0)
    out = jnp.dot(z, w2, preferred_element_type=jnp.float32) + b2
    out_ref[...] = out.astype(out_ref.dtype)


# ----------------------------------------------------------------------------
# Wrapper: one pallas_call for the whole forward pass.
# ----------------------------------------------------------------------------
@jax.jit
def lstm_model_forward(x, lstm_params, fc_params):
    """x: (B, T, input_size), batch-first like nn.LSTM(batch_first=True)."""
    B, T, D_in = x.shape
    num_layers = len(lstm_params)
    H = lstm_params[0][1].shape[0]                 # w_hh is (H, 4H)
    w1, b1, w2, b2 = fc_params
    O = w2.shape[1]

    Bp = max(8, _round_up(B, 8))                   # f32 sublane alignment
    order, offsets, total_rows, lane_w = _slab_layout(num_layers, D_in, H)

    # Batch-first -> time-major, batch zero-padded to Bp, flattened.
    x_tm = jnp.transpose(x, (1, 0, 2)).astype(jnp.float32)     # (T, B, D_in)
    x_tm = jnp.pad(x_tm, ((0, 0), (0, Bp - B), (0, 0)))
    x_flat = x_tm.reshape(T * Bp, D_in)

    # Pack every parameter into one (total_rows, 4H) slab -> 2 input DMAs.
    pieces = {}
    w_ih0, w_hh0, bsum0 = lstm_params[0]
    pieces["w_ih0"], pieces["w_hh0"], pieces["b0"] = w_ih0, w_hh0, bsum0
    for l in range(1, num_layers):
        w_ih, w_hh, bsum = lstm_params[l]
        pieces[f"wcat{l}"] = jnp.concatenate([w_ih, w_hh], axis=0)  # (2H, 4H)
        pieces[f"b{l}"] = bsum
    pieces["w1"], pieces["b1"], pieces["w2"], pieces["b2"] = w1, b1, w2, b2

    blocks = []
    for name, nrows in order:
        m = pieces[name].astype(jnp.float32)
        r, c = m.shape
        m = jnp.pad(m, ((0, _round_up(nrows, 8) - r), (0, lane_w - c)))
        blocks.append(m)
    slab = jnp.concatenate(blocks, axis=0)         # (total_rows, 4H)

    vmem = pl.BlockSpec(memory_space=pltpu.MemorySpace.VMEM)
    kernel = functools.partial(
        _fused_lstm_mlp_kernel, num_layers=num_layers, seq_len=T,
        batch_pad=Bp, hidden=H, offsets=offsets)

    out_pad = pl.pallas_call(
        kernel,
        out_shape=jax.ShapeDtypeStruct((Bp, lane_w), jnp.float32),
        in_specs=[vmem, vmem],
        out_specs=vmem,
    )(x_flat, slab)
    return out_pad[:B, :O]


# ----------------------------------------------------------------------------
# Parameter construction (deterministic, PyTorch-default-style uniform init).
# Weights are stored pre-transposed for x @ W (gate column order [i, f, g, o]);
# b_ih and b_hh are sampled independently (matching PyTorch's distribution)
# and folded by summation.
# ----------------------------------------------------------------------------
def init_params(key, input_size, hidden_size, num_layers, output_size):
    lstm = []
    k = 1.0 / jnp.sqrt(jnp.float32(hidden_size))
    for layer in range(num_layers):
        d_in = input_size if layer == 0 else hidden_size
        key, k1, k2, k3, k4 = jax.random.split(key, 5)
        w_ih = jax.random.uniform(k1, (d_in, 4 * hidden_size), jnp.float32, -k, k)
        w_hh = jax.random.uniform(k2, (hidden_size, 4 * hidden_size), jnp.float32, -k, k)
        b_ih = jax.random.uniform(k3, (1, 4 * hidden_size), jnp.float32, -k, k)
        b_hh = jax.random.uniform(k4, (1, 4 * hidden_size), jnp.float32, -k, k)
        lstm.append((w_ih, w_hh, b_ih + b_hh))

    key, k1, k2, k3, k4 = jax.random.split(key, 5)
    kf1 = 1.0 / jnp.sqrt(jnp.float32(hidden_size))
    kf2 = 1.0 / jnp.sqrt(jnp.float32(25))
    w1 = jax.random.uniform(k1, (hidden_size, 25), jnp.float32, -kf1, kf1)
    b1 = jax.random.uniform(k2, (1, 25), jnp.float32, -kf1, kf1)
    w2 = jax.random.uniform(k3, (25, output_size), jnp.float32, -kf2, kf2)
    b2 = jax.random.uniform(k4, (1, output_size), jnp.float32, -kf2, kf2)
    return tuple(lstm), (w1, b1, w2, b2)


if __name__ == "__main__":
    # Small shapes consistent with the module.
    B, T = 2, 8
    input_size, hidden_size, num_layers, output_size = 8, 32, 2, 4

    key = jax.random.PRNGKey(0)
    key, xkey = jax.random.split(key)
    x = jax.random.normal(xkey, (B, T, input_size), dtype=jnp.float32)

    lstm_params, fc_params = init_params(
        key, input_size, hidden_size, num_layers, output_size)

    out = lstm_model_forward(x, lstm_params, fc_params)
    out = jax.block_until_ready(out)
    assert out.shape == (B, output_size), out.shape
    print("KERNEL_OK")
</pallas_src>

<mosaic_0001>
module attributes {stable_mosaic.version = 11 : i64} {
  func.func @_fused_lstm_mlp_kernel(%arg0: memref<64x8xf32, #tpu.memory_space<vmem>>, %arg1: memref<296x128xf32, #tpu.memory_space<vmem>>, %arg2: memref<8x128xf32, #tpu.memory_space<vmem>>) attributes {dimension_semantics = [], scalar_prefetch = 0 : i64, scratch_operands = 0 : i64, tpu.core_type = #tpu.core_type<tc>} {
    %c0 = arith.constant 0 : index
    %c0_0 = arith.constant 0 : index
    %0 = vector.load %arg0[%c0, %c0_0] : memref<64x8xf32, #tpu.memory_space<vmem>>, vector<64x8xf32>
    %c0_1 = arith.constant 0 : index
    %c0_2 = arith.constant 0 : index
    %1 = vector.load %arg1[%c0_1, %c0_2] : memref<296x128xf32, #tpu.memory_space<vmem>>, vector<8x128xf32>
    %c8 = arith.constant 8 : index
    %c0_3 = arith.constant 0 : index
    %2 = vector.load %arg1[%c8, %c0_3] : memref<296x128xf32, #tpu.memory_space<vmem>>, vector<32x128xf32>
    %c40 = arith.constant 40 : index
    %c0_4 = arith.constant 0 : index
    %3 = vector.load %arg1[%c40, %c0_4] : memref<296x128xf32, #tpu.memory_space<vmem>>, vector<1x128xf32>
    %cst = arith.constant dense<0.000000e+00> : vector<64x128xf32>
    %4 = tpu.matmul %0, %1, %cst {dimension_numbers = #tpu.dot_dimension_numbers<[1], [0], [0], [1], [0, 0, 1, 1], [], []>} : vector<64x8xf32>, vector<8x128xf32>, vector<64x128xf32> -> vector<64x128xf32>
    %5 = vector.broadcast %3 : vector<1x128xf32> to vector<64x128xf32>
    %6 = arith.addf %4, %5 : vector<64x128xf32>
    %c48 = arith.constant 48 : index
    %c0_5 = arith.constant 0 : index
    %7 = vector.load %arg1[%c48, %c0_5] : memref<296x128xf32, #tpu.memory_space<vmem>>, vector<64x128xf32>
    %c152 = arith.constant 152 : index
    %c0_6 = arith.constant 0 : index
    %8 = vector.load %arg1[%c152, %c0_6] : memref<296x128xf32, #tpu.memory_space<vmem>>, vector<1x128xf32>
    %9 = vector.shape_cast %8 : vector<1x128xf32> to vector<1x128xf32>
    %10 = vector.broadcast %9 : vector<1x128xf32> to vector<8x128xf32>
    %cst_7 = arith.constant 0.000000e+00 : f32
    %11 = vector.broadcast %cst_7 : f32 to vector<8x32xf32>
    %cst_8 = arith.constant 0.000000e+00 : f32
    %12 = vector.broadcast %cst_8 : f32 to vector<8x32xf32>
    %cst_9 = arith.constant 0.000000e+00 : f32
    %13 = vector.broadcast %cst_9 : f32 to vector<8x32xf32>
    %cst_10 = arith.constant 0.000000e+00 : f32
    %14 = vector.broadcast %cst_10 : f32 to vector<8x32xf32>
    %15 = vector.extract_strided_slice %6 {offsets = [0, 0], sizes = [8, 128], strides = [1, 1]} : vector<64x128xf32> to vector<8x128xf32>
    %cst_11 = arith.constant dense<0.000000e+00> : vector<8x128xf32>
    %16 = tpu.matmul %11, %2, %cst_11 {dimension_numbers = #tpu.dot_dimension_numbers<[1], [0], [0], [1], [0, 0, 1, 1], [], []>} : vector<8x32xf32>, vector<32x128xf32>, vector<8x128xf32> -> vector<8x128xf32>
    %17 = arith.addf %15, %16 : vector<8x128xf32>
    %cst_12 = arith.constant 5.000000e-01 : f32
    %18 = vector.broadcast %cst_12 : f32 to vector<8x128xf32>
    %19 = arith.mulf %18, %17 : vector<8x128xf32>
    %20 = math.tanh %19 : vector<8x128xf32>
    %cst_13 = arith.constant 5.000000e-01 : f32
    %21 = vector.broadcast %cst_13 : f32 to vector<8x128xf32>
    %22 = arith.mulf %21, %20 : vector<8x128xf32>
    %cst_14 = arith.constant 5.000000e-01 : f32
    %23 = vector.broadcast %cst_14 : f32 to vector<8x128xf32>
    %24 = arith.addf %22, %23 : vector<8x128xf32>
    %25 = math.tanh %17 : vector<8x128xf32>
    %26 = vector.extract_strided_slice %24 {offsets = [0, 0], sizes = [8, 32], strides = [1, 1]} : vector<8x128xf32> to vector<8x32xf32>
    %27 = vector.extract_strided_slice %24 {offsets = [0, 32], sizes = [8, 32], strides = [1, 1]} : vector<8x128xf32> to vector<8x32xf32>
    %28 = vector.extract_strided_slice %24 {offsets = [0, 96], sizes = [8, 32], strides = [1, 1]} : vector<8x128xf32> to vector<8x32xf32>
    %29 = vector.extract_strided_slice %25 {offsets = [0, 64], sizes = [8, 32], strides = [1, 1]} : vector<8x128xf32> to vector<8x32xf32>
    %30 = arith.mulf %27, %13 : vector<8x32xf32>
    %31 = arith.mulf %26, %29 : vector<8x32xf32>
    %32 = arith.addf %30, %31 : vector<8x32xf32>
    %33 = math.tanh %32 : vector<8x32xf32>
    %34 = arith.mulf %28, %33 : vector<8x32xf32>
    %35 = tpu.concatenate %34, %12 in 1 : vector<8x32xf32>, vector<8x32xf32> -> vector<8x64xf32>
    %cst_15 = arith.constant dense<0.000000e+00> : vector<8x128xf32>
    %36 = tpu.matmul %35, %7, %cst_15 {dimension_numbers = #tpu.dot_dimension_numbers<[1], [0], [0], [1], [0, 0, 1, 1], [], []>} : vector<8x64xf32>, vector<64x128xf32>, vector<8x128xf32> -> vector<8x128xf32>
    %37 = arith.addf %36, %10 : vector<8x128xf32>
    %cst_16 = arith.constant 5.000000e-01 : f32
    %38 = vector.broadcast %cst_16 : f32 to vector<8x128xf32>
    %39 = arith.mulf %38, %37 : vector<8x128xf32>
    %40 = math.tanh %39 : vector<8x128xf32>
    %cst_17 = arith.constant 5.000000e-01 : f32
    %41 = vector.broadcast %cst_17 : f32 to vector<8x128xf32>
    %42 = arith.mulf %41, %40 : vector<8x128xf32>
    %cst_18 = arith.constant 5.000000e-01 : f32
    %43 = vector.broadcast %cst_18 : f32 to vector<8x128xf32>
    %44 = arith.addf %42, %43 : vector<8x128xf32>
    %45 = math.tanh %37 : vector<8x128xf32>
    %46 = vector.extract_strided_slice %44 {offsets = [0, 0], sizes = [8, 32], strides = [1, 1]} : vector<8x128xf32> to vector<8x32xf32>
    %47 = vector.extract_strided_slice %44 {offsets = [0, 32], sizes = [8, 32], strides = [1, 1]} : vector<8x128xf32> to vector<8x32xf32>
    %48 = vector.extract_strided_slice %44 {offsets = [0, 96], sizes = [8, 32], strides = [1, 1]} : vector<8x128xf32> to vector<8x32xf32>
    %49 = vector.extract_strided_slice %45 {offsets = [0, 64], sizes = [8, 32], strides = [1, 1]} : vector<8x128xf32> to vector<8x32xf32>
    %50 = arith.mulf %47, %14 : vector<8x32xf32>
    %51 = arith.mulf %46, %49 : vector<8x32xf32>
    %52 = arith.addf %50, %51 : vector<8x32xf32>
    %53 = math.tanh %52 : vector<8x32xf32>
    %54 = arith.mulf %48, %53 : vector<8x32xf32>
    %55 = vector.extract_strided_slice %6 {offsets = [8, 0], sizes = [8, 128], strides = [1, 1]} : vector<64x128xf32> to vector<8x128xf32>
    %cst_19 = arith.constant dense<0.000000e+00> : vector<8x128xf32>
    %56 = tpu.matmul %34, %2, %cst_19 {dimension_numbers = #tpu.dot_dimension_numbers<[1], [0], [0], [1], [0, 0, 1, 1], [], []>} : vector<8x32xf32>, vector<32x128xf32>, vector<8x128xf32> -> vector<8x128xf32>
    %57 = arith.addf %55, %56 : vector<8x128xf32>
    %cst_20 = arith.constant 5.000000e-01 : f32
    %58 = vector.broadcast %cst_20 : f32 to vector<8x128xf32>
    %59 = arith.mulf %58, %57 : vector<8x128xf32>
    %60 = math.tanh %59 : vector<8x128xf32>
    %cst_21 = arith.constant 5.000000e-01 : f32
    %61 = vector.broadcast %cst_21 : f32 to vector<8x128xf32>
    %62 = arith.mulf %61, %60 : vector<8x128xf32>
    %cst_22 = arith.constant 5.000000e-01 : f32
    %63 = vector.broadcast %cst_22 : f32 to vector<8x128xf32>
    %64 = arith.addf %62, %63 : vector<8x128xf32>
    %65 = math.tanh %57 : vector<8x128xf32>
    %66 = vector.extract_strided_slice %64 {offsets = [0, 0], sizes = [8, 32], strides = [1, 1]} : vector<8x128xf32> to vector<8x32xf32>
    %67 = vector.extract_strided_slice %64 {offsets = [0, 32], sizes = [8, 32], strides = [1, 1]} : vector<8x128xf32> to vector<8x32xf32>
    %68 = vector.extract_strided_slice %64 {offsets = [0, 96], sizes = [8, 32], strides = [1, 1]} : vector<8x128xf32> to vector<8x32xf32>
    %69 = vector.extract_strided_slice %65 {offsets = [0, 64], sizes = [8, 32], strides = [1, 1]} : vector<8x128xf32> to vector<8x32xf32>
    %70 = arith.mulf %67, %32 : vector<8x32xf32>
    %71 = arith.mulf %66, %69 : vector<8x32xf32>
    %72 = arith.addf %70, %71 : vector<8x32xf32>
    %73 = math.tanh %72 : vector<8x32xf32>
    %74 = arith.mulf %68, %73 : vector<8x32xf32>
    %75 = tpu.concatenate %74, %54 in 1 : vector<8x32xf32>, vector<8x32xf32> -> vector<8x64xf32>
    %cst_23 = arith.constant dense<0.000000e+00> : vector<8x128xf32>
    %76 = tpu.matmul %75, %7, %cst_23 {dimension_numbers = #tpu.dot_dimension_numbers<[1], [0], [0], [1], [0, 0, 1, 1], [], []>} : vector<8x64xf32>, vector<64x128xf32>, vector<8x128xf32> -> vector<8x128xf32>
    %77 = arith.addf %76, %10 : vector<8x128xf32>
    %cst_24 = arith.constant 5.000000e-01 : f32
    %78 = vector.broadcast %cst_24 : f32 to vector<8x128xf32>
    %79 = arith.mulf %78, %77 : vector<8x128xf32>
    %80 = math.tanh %79 : vector<8x128xf32>
    %cst_25 = arith.constant 5.000000e-01 : f32
    %81 = vector.broadcast %cst_25 : f32 to vector<8x128xf32>
    %82 = arith.mulf %81, %80 : vector<8x128xf32>
    %cst_26 = arith.constant 5.000000e-01 : f32
    %83 = vector.broadcast %cst_26 : f32 to vector<8x128xf32>
    %84 = arith.addf %82, %83 : vector<8x128xf32>
    %85 = math.tanh %77 : vector<8x128xf32>
    %86 = vector.extract_strided_slice %84 {offsets = [0, 0], sizes = [8, 32], strides = [1, 1]} : vector<8x128xf32> to vector<8x32xf32>
    %87 = vector.extract_strided_slice %84 {offsets = [0, 32], sizes = [8, 32], strides = [1, 1]} : vector<8x128xf32> to vector<8x32xf32>
    %88 = vector.extract_strided_slice %84 {offsets = [0, 96], sizes = [8, 32], strides = [1, 1]} : vector<8x128xf32> to vector<8x32xf32>
    %89 = vector.extract_strided_slice %85 {offsets = [0, 64], sizes = [8, 32], strides = [1, 1]} : vector<8x128xf32> to vector<8x32xf32>
    %90 = arith.mulf %87, %52 : vector<8x32xf32>
    %91 = arith.mulf %86, %89 : vector<8x32xf32>
    %92 = arith.addf %90, %91 : vector<8x32xf32>
    %93 = math.tanh %92 : vector<8x32xf32>
    %94 = arith.mulf %88, %93 : vector<8x32xf32>
    %95 = vector.extract_strided_slice %6 {offsets = [16, 0], sizes = [8, 128], strides = [1, 1]} : vector<64x128xf32> to vector<8x128xf32>
    %cst_27 = arith.constant dense<0.000000e+00> : vector<8x128xf32>
    %96 = tpu.matmul %74, %2, %cst_27 {dimension_numbers = #tpu.dot_dimension_numbers<[1], [0], [0], [1], [0, 0, 1, 1], [], []>} : vector<8x32xf32>, vector<32x128xf32>, vector<8x128xf32> -> vector<8x128xf32>
    %97 = arith.addf %95, %96 : vector<8x128xf32>
    %cst_28 = arith.constant 5.000000e-01 : f32
    %98 = vector.broadcast %cst_28 : f32 to vector<8x128xf32>
    %99 = arith.mulf %98, %97 : vector<8x128xf32>
    %100 = math.tanh %99 : vector<8x128xf32>
    %cst_29 = arith.constant 5.000000e-01 : f32
    %101 = vector.broadcast %cst_29 : f32 to vector<8x128xf32>
    %102 = arith.mulf %101, %100 : vector<8x128xf32>
    %cst_30 = arith.constant 5.000000e-01 : f32
    %103 = vector.broadcast %cst_30 : f32 to vector<8x128xf32>
    %104 = arith.addf %102, %103 : vector<8x128xf32>
    %105 = math.tanh %97 : vector<8x128xf32>
    %106 = vector.extract_strided_slice %104 {offsets = [0, 0], sizes = [8, 32], strides = [1, 1]} : vector<8x128xf32> to vector<8x32xf32>
    %107 = vector.extract_strided_slice %104 {offsets = [0, 32], sizes = [8, 32], strides = [1, 1]} : vector<8x128xf32> to vector<8x32xf32>
    %108 = vector.extract_strided_slice %104 {offsets = [0, 96], sizes = [8, 32], strides = [1, 1]} : vector<8x128xf32> to vector<8x32xf32>
    %109 = vector.extract_strided_slice %105 {offsets = [0, 64], sizes = [8, 32], strides = [1, 1]} : vector<8x128xf32> to vector<8x32xf32>
    %110 = arith.mulf %107, %72 : vector<8x32xf32>
    %111 = arith.mulf %106, %109 : vector<8x32xf32>
    %112 = arith.addf %110, %111 : vector<8x32xf32>
    %113 = math.tanh %112 : vector<8x32xf32>
    %114 = arith.mulf %108, %113 : vector<8x32xf32>
    %115 = tpu.concatenate %114, %94 in 1 : vector<8x32xf32>, vector<8x32xf32> -> vector<8x64xf32>
    %cst_31 = arith.constant dense<0.000000e+00> : vector<8x128xf32>
    %116 = tpu.matmul %115, %7, %cst_31 {dimension_numbers = #tpu.dot_dimension_numbers<[1], [0], [0], [1], [0, 0, 1, 1], [], []>} : vector<8x64xf32>, vector<64x128xf32>, vector<8x128xf32> -> vector<8x128xf32>
    %117 = arith.addf %116, %10 : vector<8x128xf32>
    %cst_32 = arith.constant 5.000000e-01 : f32
    %118 = vector.broadcast %cst_32 : f32 to vector<8x128xf32>
    %119 = arith.mulf %118, %117 : vector<8x128xf32>
    %120 = math.tanh %119 : vector<8x128xf32>
    %cst_33 = arith.constant 5.000000e-01 : f32
    %121 = vector.broadcast %cst_33 : f32 to vector<8x128xf32>
    %122 = arith.mulf %121, %120 : vector<8x128xf32>
    %cst_34 = arith.constant 5.000000e-01 : f32
    %123 = vector.broadcast %cst_34 : f32 to vector<8x128xf32>
    %124 = arith.addf %122, %123 : vector<8x128xf32>
    %125 = math.tanh %117 : vector<8x128xf32>
    %126 = vector.extract_strided_slice %124 {offsets = [0, 0], sizes = [8, 32], strides = [1, 1]} : vector<8x128xf32> to vector<8x32xf32>
    %127 = vector.extract_strided_slice %124 {offsets = [0, 32], sizes = [8, 32], strides = [1, 1]} : vector<8x128xf32> to vector<8x32xf32>
    %128 = vector.extract_strided_slice %124 {offsets = [0, 96], sizes = [8, 32], strides = [1, 1]} : vector<8x128xf32> to vector<8x32xf32>
    %129 = vector.extract_strided_slice %125 {offsets = [0, 64], sizes = [8, 32], strides = [1, 1]} : vector<8x128xf32> to vector<8x32xf32>
    %130 = arith.mulf %127, %92 : vector<8x32xf32>
    %131 = arith.mulf %126, %129 : vector<8x32xf32>
    %132 = arith.addf %130, %131 : vector<8x32xf32>
    %133 = math.tanh %132 : vector<8x32xf32>
    %134 = arith.mulf %128, %133 : vector<8x32xf32>
    %135 = vector.extract_strided_slice %6 {offsets = [24, 0], sizes = [8, 128], strides = [1, 1]} : vector<64x128xf32> to vector<8x128xf32>
    %cst_35 = arith.constant dense<0.000000e+00> : vector<8x128xf32>
    %136 = tpu.matmul %114, %2, %cst_35 {dimension_numbers = #tpu.dot_dimension_numbers<[1], [0], [0], [1], [0, 0, 1, 1], [], []>} : vector<8x32xf32>, vector<32x128xf32>, vector<8x128xf32> -> vector<8x128xf32>
    %137 = arith.addf %135, %136 : vector<8x128xf32>
    %cst_36 = arith.constant 5.000000e-01 : f32
    %138 = vector.broadcast %cst_36 : f32 to vector<8x128xf32>
    %139 = arith.mulf %138, %137 : vector<8x128xf32>
    %140 = math.tanh %139 : vector<8x128xf32>
    %cst_37 = arith.constant 5.000000e-01 : f32
    %141 = vector.broadcast %cst_37 : f32 to vector<8x128xf32>
    %142 = arith.mulf %141, %140 : vector<8x128xf32>
    %cst_38 = arith.constant 5.000000e-01 : f32
    %143 = vector.broadcast %cst_38 : f32 to vector<8x128xf32>
    %144 = arith.addf %142, %143 : vector<8x128xf32>
    %145 = math.tanh %137 : vector<8x128xf32>
    %146 = vector.extract_strided_slice %144 {offsets = [0, 0], sizes = [8, 32], strides = [1, 1]} : vector<8x128xf32> to vector<8x32xf32>
    %147 = vector.extract_strided_slice %144 {offsets = [0, 32], sizes = [8, 32], strides = [1, 1]} : vector<8x128xf32> to vector<8x32xf32>
    %148 = vector.extract_strided_slice %144 {offsets = [0, 96], sizes = [8, 32], strides = [1, 1]} : vector<8x128xf32> to vector<8x32xf32>
    %149 = vector.extract_strided_slice %145 {offsets = [0, 64], sizes = [8, 32], strides = [1, 1]} : vector<8x128xf32> to vector<8x32xf32>
    %150 = arith.mulf %147, %112 : vector<8x32xf32>
    %151 = arith.mulf %146, %149 : vector<8x32xf32>
    %152 = arith.addf %150, %151 : vector<8x32xf32>
    %153 = math.tanh %152 : vector<8x32xf32>
    %154 = arith.mulf %148, %153 : vector<8x32xf32>
    %155 = tpu.concatenate %154, %134 in 1 : vector<8x32xf32>, vector<8x32xf32> -> vector<8x64xf32>
    %cst_39 = arith.constant dense<0.000000e+00> : vector<8x128xf32>
    %156 = tpu.matmul %155, %7, %cst_39 {dimension_numbers = #tpu.dot_dimension_numbers<[1], [0], [0], [1], [0, 0, 1, 1], [], []>} : vector<8x64xf32>, vector<64x128xf32>, vector<8x128xf32> -> vector<8x128xf32>
    %157 = arith.addf %156, %10 : vector<8x128xf32>
    %cst_40 = arith.constant 5.000000e-01 : f32
    %158 = vector.broadcast %cst_40 : f32 to vector<8x128xf32>
    %159 = arith.mulf %158, %157 : vector<8x128xf32>
    %160 = math.tanh %159 : vector<8x128xf32>
    %cst_41 = arith.constant 5.000000e-01 : f32
    %161 = vector.broadcast %cst_41 : f32 to vector<8x128xf32>
    %162 = arith.mulf %161, %160 : vector<8x128xf32>
    %cst_42 = arith.constant 5.000000e-01 : f32
    %163 = vector.broadcast %cst_42 : f32 to vector<8x128xf32>
    %164 = arith.addf %162, %163 : vector<8x128xf32>
    %165 = math.tanh %157 : vector<8x128xf32>
    %166 = vector.extract_strided_slice %164 {offsets = [0, 0], sizes = [8, 32], strides = [1, 1]} : vector<8x128xf32> to vector<8x32xf32>
    %167 = vector.extract_strided_slice %164 {offsets = [0, 32], sizes = [8, 32], strides = [1, 1]} : vector<8x128xf32> to vector<8x32xf32>
    %168 = vector.extract_strided_slice %164 {offsets = [0, 96], sizes = [8, 32], strides = [1, 1]} : vector<8x128xf32> to vector<8x32xf32>
    %169 = vector.extract_strided_slice %165 {offsets = [0, 64], sizes = [8, 32], strides = [1, 1]} : vector<8x128xf32> to vector<8x32xf32>
    %170 = arith.mulf %167, %132 : vector<8x32xf32>
    %171 = arith.mulf %166, %169 : vector<8x32xf32>
    %172 = arith.addf %170, %171 : vector<8x32xf32>
    %173 = math.tanh %172 : vector<8x32xf32>
    %174 = arith.mulf %168, %173 : vector<8x32xf32>
    %175 = vector.extract_strided_slice %6 {offsets = [32, 0], sizes = [8, 128], strides = [1, 1]} : vector<64x128xf32> to vector<8x128xf32>
    %cst_43 = arith.constant dense<0.000000e+00> : vector<8x128xf32>
    %176 = tpu.matmul %154, %2, %cst_43 {dimension_numbers = #tpu.dot_dimension_numbers<[1], [0], [0], [1], [0, 0, 1, 1], [], []>} : vector<8x32xf32>, vector<32x128xf32>, vector<8x128xf32> -> vector<8x128xf32>
    %177 = arith.addf %175, %176 : vector<8x128xf32>
    %cst_44 = arith.constant 5.000000e-01 : f32
    %178 = vector.broadcast %cst_44 : f32 to vector<8x128xf32>
    %179 = arith.mulf %178, %177 : vector<8x128xf32>
    %180 = math.tanh %179 : vector<8x128xf32>
    %cst_45 = arith.constant 5.000000e-01 : f32
    %181 = vector.broadcast %cst_45 : f32 to vector<8x128xf32>
    %182 = arith.mulf %181, %180 : vector<8x128xf32>
    %cst_46 = arith.constant 5.000000e-01 : f32
    %183 = vector.broadcast %cst_46 : f32 to vector<8x128xf32>
    %184 = arith.addf %182, %183 : vector<8x128xf32>
    %185 = math.tanh %177 : vector<8x128xf32>
    %186 = vector.extract_strided_slice %184 {offsets = [0, 0], sizes = [8, 32], strides = [1, 1]} : vector<8x128xf32> to vector<8x32xf32>
    %187 = vector.extract_strided_slice %184 {offsets = [0, 32], sizes = [8, 32], strides = [1, 1]} : vector<8x128xf32> to vector<8x32xf32>
    %188 = vector.extract_strided_slice %184 {offsets = [0, 96], sizes = [8, 32], strides = [1, 1]} : vector<8x128xf32> to vector<8x32xf32>
    %189 = vector.extract_strided_slice %185 {offsets = [0, 64], sizes = [8, 32], strides = [1, 1]} : vector<8x128xf32> to vector<8x32xf32>
    %190 = arith.mulf %187, %152 : vector<8x32xf32>
    %191 = arith.mulf %186, %189 : vector<8x32xf32>
    %192 = arith.addf %190, %191 : vector<8x32xf32>
    %193 = math.tanh %192 : vector<8x32xf32>
    %194 = arith.mulf %188, %193 : vector<8x32xf32>
    %195 = tpu.concatenate %194, %174 in 1 : vector<8x32xf32>, vector<8x32xf32> -> vector<8x64xf32>
    %cst_47 = arith.constant dense<0.000000e+00> : vector<8x128xf32>
    %196 = tpu.matmul %195, %7, %cst_47 {dimension_numbers = #tpu.dot_dimension_numbers<[1], [0], [0], [1], [0, 0, 1, 1], [], []>} : vector<8x64xf32>, vector<64x128xf32>, vector<8x128xf32> -> vector<8x128xf32>
    %197 = arith.addf %196, %10 : vector<8x128xf32>
    %cst_48 = arith.constant 5.000000e-01 : f32
    %198 = vector.broadcast %cst_48 : f32 to vector<8x128xf32>
    %199 = arith.mulf %198, %197 : vector<8x128xf32>
    %200 = math.tanh %199 : vector<8x128xf32>
    %cst_49 = arith.constant 5.000000e-01 : f32
    %201 = vector.broadcast %cst_49 : f32 to vector<8x128xf32>
    %202 = arith.mulf %201, %200 : vector<8x128xf32>
    %cst_50 = arith.constant 5.000000e-01 : f32
    %203 = vector.broadcast %cst_50 : f32 to vector<8x128xf32>
    %204 = arith.addf %202, %203 : vector<8x128xf32>
    %205 = math.tanh %197 : vector<8x128xf32>
    %206 = vector.extract_strided_slice %204 {offsets = [0, 0], sizes = [8, 32], strides = [1, 1]} : vector<8x128xf32> to vector<8x32xf32>
    %207 = vector.extract_strided_slice %204 {offsets = [0, 32], sizes = [8, 32], strides = [1, 1]} : vector<8x128xf32> to vector<8x32xf32>
    %208 = vector.extract_strided_slice %204 {offsets = [0, 96], sizes = [8, 32], strides = [1, 1]} : vector<8x128xf32> to vector<8x32xf32>
    %209 = vector.extract_strided_slice %205 {offsets = [0, 64], sizes = [8, 32], strides = [1, 1]} : vector<8x128xf32> to vector<8x32xf32>
    %210 = arith.mulf %207, %172 : vector<8x32xf32>
    %211 = arith.mulf %206, %209 : vector<8x32xf32>
    %212 = arith.addf %210, %211 : vector<8x32xf32>
    %213 = math.tanh %212 : vector<8x32xf32>
    %214 = arith.mulf %208, %213 : vector<8x32xf32>
    %215 = vector.extract_strided_slice %6 {offsets = [40, 0], sizes = [8, 128], strides = [1, 1]} : vector<64x128xf32> to vector<8x128xf32>
    %cst_51 = arith.constant dense<0.000000e+00> : vector<8x128xf32>
    %216 = tpu.matmul %194, %2, %cst_51 {dimension_numbers = #tpu.dot_dimension_numbers<[1], [0], [0], [1], [0, 0, 1, 1], [], []>} : vector<8x32xf32>, vector<32x128xf32>, vector<8x128xf32> -> vector<8x128xf32>
    %217 = arith.addf %215, %216 : vector<8x128xf32>
    %cst_52 = arith.constant 5.000000e-01 : f32
    %218 = vector.broadcast %cst_52 : f32 to vector<8x128xf32>
    %219 = arith.mulf %218, %217 : vector<8x128xf32>
    %220 = math.tanh %219 : vector<8x128xf32>
    %cst_53 = arith.constant 5.000000e-01 : f32
    %221 = vector.broadcast %cst_53 : f32 to vector<8x128xf32>
    %222 = arith.mulf %221, %220 : vector<8x128xf32>
    %cst_54 = arith.constant 5.000000e-01 : f32
    %223 = vector.broadcast %cst_54 : f32 to vector<8x128xf32>
    %224 = arith.addf %222, %223 : vector<8x128xf32>
    %225 = math.tanh %217 : vector<8x128xf32>
    %226 = vector.extract_strided_slice %224 {offsets = [0, 0], sizes = [8, 32], strides = [1, 1]} : vector<8x128xf32> to vector<8x32xf32>
    %227 = vector.extract_strided_slice %224 {offsets = [0, 32], sizes = [8, 32], strides = [1, 1]} : vector<8x128xf32> to vector<8x32xf32>
    %228 = vector.extract_strided_slice %224 {offsets = [0, 96], sizes = [8, 32], strides = [1, 1]} : vector<8x128xf32> to vector<8x32xf32>
    %229 = vector.extract_strided_slice %225 {offsets = [0, 64], sizes = [8, 32], strides = [1, 1]} : vector<8x128xf32> to vector<8x32xf32>
    %230 = arith.mulf %227, %192 : vector<8x32xf32>
    %231 = arith.mulf %226, %229 : vector<8x32xf32>
    %232 = arith.addf %230, %231 : vector<8x32xf32>
    %233 = math.tanh %232 : vector<8x32xf32>
    %234 = arith.mulf %228, %233 : vector<8x32xf32>
    %235 = tpu.concatenate %234, %214 in 1 : vector<8x32xf32>, vector<8x32xf32> -> vector<8x64xf32>
    %cst_55 = arith.constant dense<0.000000e+00> : vector<8x128xf32>
    %236 = tpu.matmul %235, %7, %cst_55 {dimension_numbers = #tpu.dot_dimension_numbers<[1], [0], [0], [1], [0, 0, 1, 1], [], []>} : vector<8x64xf32>, vector<64x128xf32>, vector<8x128xf32> -> vector<8x128xf32>
    %237 = arith.addf %236, %10 : vector<8x128xf32>
    %cst_56 = arith.constant 5.000000e-01 : f32
    %238 = vector.broadcast %cst_56 : f32 to vector<8x128xf32>
    %239 = arith.mulf %238, %237 : vector<8x128xf32>
    %240 = math.tanh %239 : vector<8x128xf32>
    %cst_57 = arith.constant 5.000000e-01 : f32
    %241 = vector.broadcast %cst_57 : f32 to vector<8x128xf32>
    %242 = arith.mulf %241, %240 : vector<8x128xf32>
    %cst_58 = arith.constant 5.000000e-01 : f32
    %243 = vector.broadcast %cst_58 : f32 to vector<8x128xf32>
    %244 = arith.addf %242, %243 : vector<8x128xf32>
    %245 = math.tanh %237 : vector<8x128xf32>
    %246 = vector.extract_strided_slice %244 {offsets = [0, 0], sizes = [8, 32], strides = [1, 1]} : vector<8x128xf32> to vector<8x32xf32>
    %247 = vector.extract_strided_slice %244 {offsets = [0, 32], sizes = [8, 32], strides = [1, 1]} : vector<8x128xf32> to vector<8x32xf32>
    %248 = vector.extract_strided_slice %244 {offsets = [0, 96], sizes = [8, 32], strides = [1, 1]} : vector<8x128xf32> to vector<8x32xf32>
    %249 = vector.extract_strided_slice %245 {offsets = [0, 64], sizes = [8, 32], strides = [1, 1]} : vector<8x128xf32> to vector<8x32xf32>
    %250 = arith.mulf %247, %212 : vector<8x32xf32>
    %251 = arith.mulf %246, %249 : vector<8x32xf32>
    %252 = arith.addf %250, %251 : vector<8x32xf32>
    %253 = math.tanh %252 : vector<8x32xf32>
    %254 = arith.mulf %248, %253 : vector<8x32xf32>
    %255 = vector.extract_strided_slice %6 {offsets = [48, 0], sizes = [8, 128], strides = [1, 1]} : vector<64x128xf32> to vector<8x128xf32>
    %cst_59 = arith.constant dense<0.000000e+00> : vector<8x128xf32>
    %256 = tpu.matmul %234, %2, %cst_59 {dimension_numbers = #tpu.dot_dimension_numbers<[1], [0], [0], [1], [0, 0, 1, 1], [], []>} : vector<8x32xf32>, vector<32x128xf32>, vector<8x128xf32> -> vector<8x128xf32>
    %257 = arith.addf %255, %256 : vector<8x128xf32>
    %cst_60 = arith.constant 5.000000e-01 : f32
    %258 = vector.broadcast %cst_60 : f32 to vector<8x128xf32>
    %259 = arith.mulf %258, %257 : vector<8x128xf32>
    %260 = math.tanh %259 : vector<8x128xf32>
    %cst_61 = arith.constant 5.000000e-01 : f32
    %261 = vector.broadcast %cst_61 : f32 to vector<8x128xf32>
    %262 = arith.mulf %261, %260 : vector<8x128xf32>
    %cst_62 = arith.constant 5.000000e-01 : f32
    %263 = vector.broadcast %cst_62 : f32 to vector<8x128xf32>
    %264 = arith.addf %262, %263 : vector<8x128xf32>
    %265 = math.tanh %257 : vector<8x128xf32>
    %266 = vector.extract_strided_slice %264 {offsets = [0, 0], sizes = [8, 32], strides = [1, 1]} : vector<8x128xf32> to vector<8x32xf32>
    %267 = vector.extract_strided_slice %264 {offsets = [0, 32], sizes = [8, 32], strides = [1, 1]} : vector<8x128xf32> to vector<8x32xf32>
    %268 = vector.extract_strided_slice %264 {offsets = [0, 96], sizes = [8, 32], strides = [1, 1]} : vector<8x128xf32> to vector<8x32xf32>
    %269 = vector.extract_strided_slice %265 {offsets = [0, 64], sizes = [8, 32], strides = [1, 1]} : vector<8x128xf32> to vector<8x32xf32>
    %270 = arith.mulf %267, %232 : vector<8x32xf32>
    %271 = arith.mulf %266, %269 : vector<8x32xf32>
    %272 = arith.addf %270, %271 : vector<8x32xf32>
    %273 = math.tanh %272 : vector<8x32xf32>
    %274 = arith.mulf %268, %273 : vector<8x32xf32>
    %275 = tpu.concatenate %274, %254 in 1 : vector<8x32xf32>, vector<8x32xf32> -> vector<8x64xf32>
    %cst_63 = arith.constant dense<0.000000e+00> : vector<8x128xf32>
    %276 = tpu.matmul %275, %7, %cst_63 {dimension_numbers = #tpu.dot_dimension_numbers<[1], [0], [0], [1], [0, 0, 1, 1], [], []>} : vector<8x64xf32>, vector<64x128xf32>, vector<8x128xf32> -> vector<8x128xf32>
    %277 = arith.addf %276, %10 : vector<8x128xf32>
    %cst_64 = arith.constant 5.000000e-01 : f32
    %278 = vector.broadcast %cst_64 : f32 to vector<8x128xf32>
    %279 = arith.mulf %278, %277 : vector<8x128xf32>
    %280 = math.tanh %279 : vector<8x128xf32>
    %cst_65 = arith.constant 5.000000e-01 : f32
    %281 = vector.broadcast %cst_65 : f32 to vector<8x128xf32>
    %282 = arith.mulf %281, %280 : vector<8x128xf32>
    %cst_66 = arith.constant 5.000000e-01 : f32
    %283 = vector.broadcast %cst_66 : f32 to vector<8x128xf32>
    %284 = arith.addf %282, %283 : vector<8x128xf32>
    %285 = math.tanh %277 : vector<8x128xf32>
    %286 = vector.extract_strided_slice %284 {offsets = [0, 0], sizes = [8, 32], strides = [1, 1]} : vector<8x128xf32> to vector<8x32xf32>
    %287 = vector.extract_strided_slice %284 {offsets = [0, 32], sizes = [8, 32], strides = [1, 1]} : vector<8x128xf32> to vector<8x32xf32>
    %288 = vector.extract_strided_slice %284 {offsets = [0, 96], sizes = [8, 32], strides = [1, 1]} : vector<8x128xf32> to vector<8x32xf32>
    %289 = vector.extract_strided_slice %285 {offsets = [0, 64], sizes = [8, 32], strides = [1, 1]} : vector<8x128xf32> to vector<8x32xf32>
    %290 = arith.mulf %287, %252 : vector<8x32xf32>
    %291 = arith.mulf %286, %289 : vector<8x32xf32>
    %292 = arith.addf %290, %291 : vector<8x32xf32>
    %293 = math.tanh %292 : vector<8x32xf32>
    %294 = arith.mulf %288, %293 : vector<8x32xf32>
    %295 = vector.extract_strided_slice %6 {offsets = [56, 0], sizes = [8, 128], strides = [1, 1]} : vector<64x128xf32> to vector<8x128xf32>
    %cst_67 = arith.constant dense<0.000000e+00> : vector<8x128xf32>
    %296 = tpu.matmul %274, %2, %cst_67 {dimension_numbers = #tpu.dot_dimension_numbers<[1], [0], [0], [1], [0, 0, 1, 1], [], []>} : vector<8x32xf32>, vector<32x128xf32>, vector<8x128xf32> -> vector<8x128xf32>
    %297 = arith.addf %295, %296 : vector<8x128xf32>
    %cst_68 = arith.constant 5.000000e-01 : f32
    %298 = vector.broadcast %cst_68 : f32 to vector<8x128xf32>
    %299 = arith.mulf %298, %297 : vector<8x128xf32>
    %300 = math.tanh %299 : vector<8x128xf32>
    %cst_69 = arith.constant 5.000000e-01 : f32
    %301 = vector.broadcast %cst_69 : f32 to vector<8x128xf32>
    %302 = arith.mulf %301, %300 : vector<8x128xf32>
    %cst_70 = arith.constant 5.000000e-01 : f32
    %303 = vector.broadcast %cst_70 : f32 to vector<8x128xf32>
    %304 = arith.addf %302, %303 : vector<8x128xf32>
    %305 = math.tanh %297 : vector<8x128xf32>
    %306 = vector.extract_strided_slice %304 {offsets = [0, 0], sizes = [8, 32], strides = [1, 1]} : vector<8x128xf32> to vector<8x32xf32>
    %307 = vector.extract_strided_slice %304 {offsets = [0, 32], sizes = [8, 32], strides = [1, 1]} : vector<8x128xf32> to vector<8x32xf32>
    %308 = vector.extract_strided_slice %304 {offsets = [0, 96], sizes = [8, 32], strides = [1, 1]} : vector<8x128xf32> to vector<8x32xf32>
    %309 = vector.extract_strided_slice %305 {offsets = [0, 64], sizes = [8, 32], strides = [1, 1]} : vector<8x128xf32> to vector<8x32xf32>
    %310 = arith.mulf %307, %272 : vector<8x32xf32>
    %311 = arith.mulf %306, %309 : vector<8x32xf32>
    %312 = arith.addf %310, %311 : vector<8x32xf32>
    %313 = math.tanh %312 : vector<8x32xf32>
    %314 = arith.mulf %308, %313 : vector<8x32xf32>
    %315 = tpu.concatenate %314, %294 in 1 : vector<8x32xf32>, vector<8x32xf32> -> vector<8x64xf32>
    %cst_71 = arith.constant dense<0.000000e+00> : vector<8x128xf32>
    %316 = tpu.matmul %315, %7, %cst_71 {dimension_numbers = #tpu.dot_dimension_numbers<[1], [0], [0], [1], [0, 0, 1, 1], [], []>} : vector<8x64xf32>, vector<64x128xf32>, vector<8x128xf32> -> vector<8x128xf32>
    %317 = arith.addf %316, %10 : vector<8x128xf32>
    %cst_72 = arith.constant 5.000000e-01 : f32
    %318 = vector.broadcast %cst_72 : f32 to vector<8x128xf32>
    %319 = arith.mulf %318, %317 : vector<8x128xf32>
    %320 = math.tanh %319 : vector<8x128xf32>
    %cst_73 = arith.constant 5.000000e-01 : f32
    %321 = vector.broadcast %cst_73 : f32 to vector<8x128xf32>
    %322 = arith.mulf %321, %320 : vector<8x128xf32>
    %cst_74 = arith.constant 5.000000e-01 : f32
    %323 = vector.broadcast %cst_74 : f32 to vector<8x128xf32>
    %324 = arith.addf %322, %323 : vector<8x128xf32>
    %325 = math.tanh %317 : vector<8x128xf32>
    %326 = vector.extract_strided_slice %324 {offsets = [0, 0], sizes = [8, 32], strides = [1, 1]} : vector<8x128xf32> to vector<8x32xf32>
    %327 = vector.extract_strided_slice %324 {offsets = [0, 32], sizes = [8, 32], strides = [1, 1]} : vector<8x128xf32> to vector<8x32xf32>
    %328 = vector.extract_strided_slice %324 {offsets = [0, 96], sizes = [8, 32], strides = [1, 1]} : vector<8x128xf32> to vector<8x32xf32>
    %329 = vector.extract_strided_slice %325 {offsets = [0, 64], sizes = [8, 32], strides = [1, 1]} : vector<8x128xf32> to vector<8x32xf32>
    %330 = arith.mulf %327, %292 : vector<8x32xf32>
    %331 = arith.mulf %326, %329 : vector<8x32xf32>
    %332 = arith.addf %330, %331 : vector<8x32xf32>
    %333 = math.tanh %332 : vector<8x32xf32>
    %334 = arith.mulf %328, %333 : vector<8x32xf32>
    %c120 = arith.constant 120 : index
    %c0_75 = arith.constant 0 : index
    %335 = vector.load %arg1[%c120, %c0_75] : memref<296x128xf32, #tpu.memory_space<vmem>>, vector<32x128xf32>
    %c152_76 = arith.constant 152 : index
    %c0_77 = arith.constant 0 : index
    %336 = vector.load %arg1[%c152_76, %c0_77] : memref<296x128xf32, #tpu.memory_space<vmem>>, vector<1x128xf32>
    %c160 = arith.constant 160 : index
    %c0_78 = arith.constant 0 : index
    %337 = vector.load %arg1[%c160, %c0_78] : memref<296x128xf32, #tpu.memory_space<vmem>>, vector<128x128xf32>
    %c288 = arith.constant 288 : index
    %c0_79 = arith.constant 0 : index
    %338 = vector.load %arg1[%c288, %c0_79] : memref<296x128xf32, #tpu.memory_space<vmem>>, vector<1x128xf32>
    %cst_80 = arith.constant dense<0.000000e+00> : vector<8x128xf32>
    %339 = tpu.matmul %334, %335, %cst_80 {dimension_numbers = #tpu.dot_dimension_numbers<[1], [0], [0], [1], [0, 0, 1, 1], [], []>} : vector<8x32xf32>, vector<32x128xf32>, vector<8x128xf32> -> vector<8x128xf32>
    %340 = vector.broadcast %336 : vector<1x128xf32> to vector<8x128xf32>
    %341 = arith.addf %339, %340 : vector<8x128xf32>
    %cst_81 = arith.constant 0.000000e+00 : f32
    %342 = vector.broadcast %cst_81 : f32 to vector<8x128xf32>
    %343 = arith.maximumf %341, %342 : vector<8x128xf32>
    %cst_82 = arith.constant dense<0.000000e+00> : vector<8x128xf32>
    %344 = tpu.matmul %343, %337, %cst_82 {dimension_numbers = #tpu.dot_dimension_numbers<[1], [0], [0], [1], [0, 0, 1, 1], [], []>} : vector<8x128xf32>, vector<128x128xf32>, vector<8x128xf32> -> vector<8x128xf32>
    %345 = vector.broadcast %338 : vector<1x128xf32> to vector<8x128xf32>
    %346 = arith.addf %344, %345 : vector<8x128xf32>
    %c0_83 = arith.constant 0 : index
    %c0_84 = arith.constant 0 : index
    %347 = vector.load %arg2[%c0_83, %c0_84] : memref<8x128xf32, #tpu.memory_space<vmem>>, vector<8x128xf32>
    tpu.vector_store %arg2[%c0_83, %c0_84], %346 {strides = array<i32>} : memref<8x128xf32, #tpu.memory_space<vmem>>, vector<8x128xf32>,
    return
  }
}

</mosaic_0001>

<llo_original>
// kernel: lstm_model_forward.1
$region0: #{lstm_model_forward.1}
  #allocation0 [shape = 'u32[]', space=smem, size = 0x4, offset = 0x4, fixed_abs, tag = 'smem constant byte address 0x4 - core index']
  #allocation1 [shape = 'u32[72,128]{1,0:T(1,128)}', space=vmem, size = 0x9000, scoped, tag = 'internal scratch']
  %s0 = inlined_call_operand.vmem [shape: f32[64,8], index: 0, kind: input, shape index: {}]
  %s1 = inlined_call_operand.vmem [shape: f32[296,128], index: 1, kind: input, shape index: {}]
  %s2 = inlined_call_operand.vmem [shape: f32[8,128], index: 2, kind: output, shape index: {}]
  %s3 = sld [smem:[#allocation0]]
  $region18: #{lstm_model_forward.1} parent=0
    _
  %s5 = ssub.s32 1, %s3
  %s6 = scalar_select 0, %s5, %s3
  // Predicated region
  $region2: #{lstm_model_forward.1} parent=0 // pred_check
    _
  $region3: #{lstm_model_forward.1} parent=0 // pred_check_branch
    %8 = sbr.rel (0) target = $region5
  $region4: #{lstm_model_forward.1} parent=0 // pred_region
    _
  $region5: #{lstm_model_forward.1} parent=0 // pred_fallthru
    _
  // Predicated region
  $region6: #{lstm_model_forward.1} parent=0 // pred_check
    _
  $region7: #{lstm_model_forward.1} parent=0 // pred_check_branch
    %10 = sbr.rel (0) target = $region9
  $region8: #{lstm_model_forward.1} parent=0 // pred_region
    _
  $region9: #{lstm_model_forward.1} parent=0 // pred_fallthru
    _
  %v11 = vld [vmem:[%s0] sm:$0xff]
  %v12 = vld [vmem:[%s0 + $0x8] sm:$0xff]
  %v13 = vld [vmem:[%s0 + $0x10] sm:$0xff]
  %v14 = vld [vmem:[%s0 + $0x18] sm:$0xff]
  %v15 = vld [vmem:[%s0 + $0x20] sm:$0xff]
  %v16 = vld [vmem:[%s0 + $0x28] sm:$0xff]
  %v17 = vld [vmem:[%s0 + $0x30] sm:$0xff]
  %v18 = vld [vmem:[%s0 + $0x38] sm:$0xff]
  %v19 = vld [vmem:[%s1] sm:$0xff]
  %v20 = vld [vmem:[%s1 + $0x8] sm:$0xff]
  %v21 = vld [vmem:[%s1 + $0x10] sm:$0xff]
  %v22 = vld [vmem:[%s1 + $0x18] sm:$0xff]
  %v23 = vld [vmem:[%s1 + $0x20] sm:$0xff]
  %v24 = vld [vmem:[%s1 + $0x28] sm:$0x1]
  %v25 = vperm.slane %v24, 0
  %vm26 = vcmask 64512
  %v28 = vsel %vm26, %v11, 0
  %v31 = vsel %vm26, %v12, 0
  %v34 = vsel %vm26, %v13, 0
  %v37 = vsel %vm26, %v14, 0
  %v40 = vsel %vm26, %v15, 0
  %v43 = vsel %vm26, %v16, 0
  %v46 = vsel %vm26, %v17, 0
  %v49 = vsel %vm26, %v18, 0
  %51 = vmatpush.msra.mxu0 0.0
  %52 = vmatpush.msra.mxu0 0.0
  %53 = vmatpush.msra.mxu0 0.0
  %54 = vmatpush.msra.mxu0 0.0
  %55 = vmatpush.msra.mxu0 0.0
  %56 = vmatpush.msra.mxu0 0.0
  %57 = vmatpush.msra.mxu0 0.0
  %58 = vmatpush.msra.mxu0 0.0
  %59 = vmatpush.msra.mxu0 0.0
  %60 = vmatpush.msra.mxu0 0.0
  %61 = vmatpush.msra.mxu0 0.0
  %62 = vmatpush.msra.mxu0 0.0
  %63 = vmatpush.msra.mxu0 0.0
  %64 = vmatpush.msra.mxu0 0.0
  %65 = vmatpush.msra.mxu0 0.0
  %66 = vmatpush.msra.mxu0 %v19
  %67 = vmatmul.f32.gmra.mxu0 %v28
  %v68 = vpop.f32.mrf.mxu0
  %v69 = vadd.f32 %v25, %v68
  %70 = vmatmul.f32.gmra.mxu0 %v31
  %v71 = vpop.f32.mrf.mxu0
  %v72 = vadd.f32 %v25, %v71
  %73 = vmatmul.f32.gmra.mxu0 %v34
  %v74 = vpop.f32.mrf.mxu0
  %v75 = vadd.f32 %v25, %v74
  %76 = vmatmul.f32.gmra.mxu0 %v37
  %v77 = vpop.f32.mrf.mxu0
  %v78 = vadd.f32 %v25, %v77
  %79 = vmatmul.f32.gmra.mxu0 %v40
  %v80 = vpop.f32.mrf.mxu0
  %v81 = vadd.f32 %v25, %v80
  %82 = vmatmul.f32.gmra.mxu0 %v43
  %v83 = vpop.f32.mrf.mxu0
  %v84 = vadd.f32 %v25, %v83
  %85 = vmatmul.f32.gmra.mxu0 %v46
  %v86 = vpop.f32.mrf.mxu0
  %v87 = vadd.f32 %v25, %v86
  %88 = vmatmul.f32.gmra.mxu0 %v49
  %v89 = vpop.f32.mrf.mxu0
  %v90 = vadd.f32 %v25, %v89
  %91 = vdwg.mxu0
  %v92 = vld [vmem:[%s1 + $0x30] sm:$0xff]
  %v93 = vld [vmem:[%s1 + $0x38] sm:$0xff]
  %v94 = vld [vmem:[%s1 + $0x40] sm:$0xff]
  %v95 = vld [vmem:[%s1 + $0x48] sm:$0xff]
  %v96 = vld [vmem:[%s1 + $0x50] sm:$0xff]
  %v97 = vld [vmem:[%s1 + $0x58] sm:$0xff]
  %v98 = vld [vmem:[%s1 + $0x60] sm:$0xff]
  %v99 = vld [vmem:[%s1 + $0x68] sm:$0xff]
  %v100 = vld [vmem:[%s1 + $0x98] sm:$0x1]
  %v101 = vperm.slane %v100, 0
  %vm102 = vcmask 261120
  %v104 = vsel %vm102, 0.0, 0
  %106 = vmatpush.msra.mxu0 0.0
  %107 = vmatpush.msra.mxu0 0.0
  %108 = vmatpush.msra.mxu0 0.0
  %109 = vmatpush.msra.mxu0 0.0
  %110 = vmatpush.msra.mxu0 0.0
  %111 = vmatpush.msra.mxu0 0.0
  %112 = vmatpush.msra.mxu0 0.0
  %113 = vmatpush.msra.mxu0 0.0
  %114 = vmatpush.msra.mxu0 0.0
  %115 = vmatpush.msra.mxu0 0.0
  %116 = vmatpush.msra.mxu0 0.0
  %117 = vmatpush.msra.mxu0 0.0
  %118 = vmatpush.msra.mxu0 %v23
  %119 = vmatpush.msra.mxu0 %v22
  %120 = vmatpush.msra.mxu0 %v21
  %121 = vmatpush.msra.mxu0 %v20
  %122 = vmatmul.f32.gmra.mxu0 %v104
  %v123 = vpop.f32.mrf.mxu0
  %v124 = vadd.f32 0.0, %v123
  %125 = vdwg.mxu0
  %v126 = vadd.f32 %v69, %v124
  %v127 = vmul.f32 %v126, 0.5
  %v128 = vtanh.pop %v127
  %v129 = vmul.f32 %v128, 0.5
  %v130 = vadd.f32 %v129, 0.5
  %v131 = vtanh.pop %v126
  %v132 = vmul.f32 %v130, 0.0
  %134 = vrot.lane.b32.xlu0 %v131, 64
  %v135 = vpop.permute.xlu0 %134
  %v137 = vmul.f32 %v130, %v135
  %139 = vrot.lane.b32.xlu0 %v137, 32
  %v140 = vpop.permute.xlu0 %139
  %v142 = vadd.f32 %v132, %v140
  %v143 = vtanh.pop %v142
  %145 = vrot.lane.b32.xlu0 %v143, 64
  %v146 = vpop.permute.xlu0 %145
  %v148 = vmul.f32 %v130, %v146
  %150 = vrot.lane.b32.xlu0 %v148, 32
  %v151 = vpop.permute.xlu0 %150
  %v153 = vsel %vm102, %v151, 0.0
  %vm154 = vcmask 523264
  %v156 = vsel %vm154, %v153, 0
  %158 = vmatpush.msra.mxu0 0.0
  %159 = vmatpush.msra.mxu0 0.0
  %160 = vmatpush.msra.mxu0 0.0
  %161 = vmatpush.msra.mxu0 0.0
  %162 = vmatpush.msra.mxu0 0.0
  %163 = vmatpush.msra.mxu0 0.0
  %164 = vmatpush.msra.mxu0 0.0
  %165 = vmatpush.msra.mxu0 0.0
  %166 = vmatpush.msra.mxu0 %v99
  %167 = vmatpush.msra.mxu0 %v98
  %168 = vmatpush.msra.mxu0 %v97
  %169 = vmatpush.msra.mxu0 %v96
  %170 = vmatpush.msra.mxu0 %v95
  %171 = vmatpush.msra.mxu0 %v94
  %172 = vmatpush.msra.mxu0 %v93
  %173 = vmatpush.msra.mxu0 %v92
  %174 = vmatmul.f32.gmra.mxu0 %v156
  %v175 = vpop.f32.mrf.mxu0
  %v176 = vadd.f32 %v101, %v175
  %177 = vdwg.mxu0
  %v178 = vmul.f32 %v176, 0.5
  %v179 = vtanh.pop %v178
  %v180 = vmul.f32 %v179, 0.5
  %v181 = vadd.f32 %v180, 0.5
  %v182 = vtanh.pop %v176
  %v183 = vmul.f32 %v181, 0.0
  %185 = vrot.lane.b32.xlu0 %v182, 64
  %v186 = vpop.permute.xlu0 %185
  %v188 = vmul.f32 %v181, %v186
  %190 = vrot.lane.b32.xlu0 %v188, 32
  %v191 = vpop.permute.xlu0 %190
  %v193 = vadd.f32 %v183, %v191
  %v194 = vtanh.pop %v193
  %196 = vrot.lane.b32.xlu0 %v194, 64
  %v197 = vpop.permute.xlu0 %196
  %v199 = vmul.f32 %v181, %v197
  %v200 = vsel %vm102, %v151, 0
  %202 = vmatpush.msra.mxu0 0.0
  %203 = vmatpush.msra.mxu0 0.0
  %204 = vmatpush.msra.mxu0 0.0
  %205 = vmatpush.msra.mxu0 0.0
  %206 = vmatpush.msra.mxu0 0.0
  %207 = vmatpush.msra.mxu0 0.0
  %208 = vmatpush.msra.mxu0 0.0
  %209 = vmatpush.msra.mxu0 0.0
  %210 = vmatpush.msra.mxu0 0.0
  %211 = vmatpush.msra.mxu0 0.0
  %212 = vmatpush.msra.mxu0 0.0
  %213 = vmatpush.msra.mxu0 0.0
  %214 = vmatpush.msra.mxu0 %v23
  %215 = vmatpush.msra.mxu0 %v22
  %216 = vmatpush.msra.mxu0 %v21
  %217 = vmatpush.msra.mxu0 %v20
  %218 = vmatmul.f32.gmra.mxu0 %v200
  %v219 = vpop.f32.mrf.mxu0
  %v220 = vadd.f32 0.0, %v219
  %221 = vdwg.mxu0
  %v222 = vadd.f32 %v72, %v220
  %v223 = vmul.f32 %v222, 0.5
  %v224 = vtanh.pop %v223
  %v225 = vmul.f32 %v224, 0.5
  %v226 = vadd.f32 %v225, 0.5
  %v227 = vtanh.pop %v222
  %v228 = vmul.f32 %v226, %v142
  %230 = vrot.lane.b32.xlu0 %v227, 64
  %v231 = vpop.permute.xlu0 %230
  %v233 = vmul.f32 %v226, %v231
  %235 = vrot.lane.b32.xlu0 %v233, 32
  %v236 = vpop.permute.xlu0 %235
  %v238 = vadd.f32 %v228, %v236
  %v239 = vtanh.pop %v238
  %241 = vrot.lane.b32.xlu0 %v239, 64
  %v242 = vpop.permute.xlu0 %241
  %v244 = vmul.f32 %v226, %v242
  %246 = vrot.lane.b32.xlu0 %v244, 32
  %v247 = vpop.permute.xlu0 %246
  %250 = vrot.lane.b32.xlu0 %v199, 64
  %v251 = vpop.permute.xlu0 %250
  %v253 = vsel %vm102, %v247, %v251
  %v255 = vsel %vm154, %v253, 0
  %257 = vmatpush.msra.mxu0 0.0
  %258 = vmatpush.msra.mxu0 0.0
  %259 = vmatpush.msra.mxu0 0.0
  %260 = vmatpush.msra.mxu0 0.0
  %261 = vmatpush.msra.mxu0 0.0
  %262 = vmatpush.msra.mxu0 0.0
  %263 = vmatpush.msra.mxu0 0.0
  %264 = vmatpush.msra.mxu0 0.0
  %265 = vmatpush.msra.mxu0 %v99
  %266 = vmatpush.msra.mxu0 %v98
  %267 = vmatpush.msra.mxu0 %v97
  %268 = vmatpush.msra.mxu0 %v96
  %269 = vmatpush.msra.mxu0 %v95
  %270 = vmatpush.msra.mxu0 %v94
  %271 = vmatpush.msra.mxu0 %v93
  %272 = vmatpush.msra.mxu0 %v92
  %273 = vmatmul.f32.gmra.mxu0 %v255
  %v274 = vpop.f32.mrf.mxu0
  %v275 = vadd.f32 %v101, %v274
  %276 = vdwg.mxu0
  %v277 = vmul.f32 %v275, 0.5
  %v278 = vtanh.pop %v277
  %v279 = vmul.f32 %v278, 0.5
  %v280 = vadd.f32 %v279, 0.5
  %v281 = vtanh.pop %v275
  %v282 = vmul.f32 %v280, %v193
  %284 = vrot.lane.b32.xlu0 %v281, 64
  %v285 = vpop.permute.xlu0 %284
  %v287 = vmul.f32 %v280, %v285
  %289 = vrot.lane.b32.xlu0 %v287, 32
  %v290 = vpop.permute.xlu0 %289
  %v292 = vadd.f32 %v282, %v290
  %v293 = vtanh.pop %v292
  %295 = vrot.lane.b32.xlu0 %v293, 64
  %v296 = vpop.permute.xlu0 %295
  %v298 = vmul.f32 %v280, %v296
  %v299 = vsel %vm102, %v247, 0
  %301 = vmatpush.msra.mxu0 0.0
  %302 = vmatpush.msra.mxu0 0.0
  %303 = vmatpush.msra.mxu0 0.0
  %304 = vmatpush.msra.mxu0 0.0
  %305 = vmatpush.msra.mxu0 0.0
  %306 = vmatpush.msra.mxu0 0.0
  %307 = vmatpush.msra.mxu0 0.0
  %308 = vmatpush.msra.mxu0 0.0
  %309 = vmatpush.msra.mxu0 0.0
  %310 = vmatpush.msra.mxu0 0.0
  %311 = vmatpush.msra.mxu0 0.0
  %312 = vmatpush.msra.mxu0 0.0
  %313 = vmatpush.msra.mxu0 %v23
  %314 = vmatpush.msra.mxu0 %v22
  %315 = vmatpush.msra.mxu0 %v21
  %316 = vmatpush.msra.mxu0 %v20
  %317 = vmatmul.f32.gmra.mxu0 %v299
  %v318 = vpop.f32.mrf.mxu0
  %v319 = vadd.f32 0.0, %v318
  %320 = vdwg.mxu0
  %v321 = vadd.f32 %v75, %v319
  %v322 = vmul.f32 %v321, 0.5
  %v323 = vtanh.pop %v322
  %v324 = vmul.f32 %v323, 0.5
  %v325 = vadd.f32 %v324, 0.5
  %v326 = vtanh.pop %v321
  %v327 = vmul.f32 %v325, %v238
  %329 = vrot.lane.b32.xlu0 %v326, 64
  %v330 = vpop.permute.xlu0 %329
  %v332 = vmul.f32 %v325, %v330
  %334 = vrot.lane.b32.xlu0 %v332, 32
  %v335 = vpop.permute.xlu0 %334
  %v337 = vadd.f32 %v327, %v335
  %v338 = vtanh.pop %v337
  %340 = vrot.lane.b32.xlu0 %v338, 64
  %v341 = vpop.permute.xlu0 %340
  %v343 = vmul.f32 %v325, %v341
  %345 = vrot.lane.b32.xlu0 %v343, 32
  %v346 = vpop.permute.xlu0 %345
  %349 = vrot.lane.b32.xlu0 %v298, 64
  %v350 = vpop.permute.xlu0 %349
  %v352 = vsel %vm102, %v346, %v350
  %v354 = vsel %vm154, %v352, 0
  %356 = vmatpush.msra.mxu0 0.0
  %357 = vmatpush.msra.mxu0 0.0
  %358 = vmatpush.msra.mxu0 0.0
  %359 = vmatpush.msra.mxu0 0.0
  %360 = vmatpush.msra.mxu0 0.0
  %361 = vmatpush.msra.mxu0 0.0
  %362 = vmatpush.msra.mxu0 0.0
  %363 = vmatpush.msra.mxu0 0.0
  %364 = vmatpush.msra.mxu0 %v99
  %365 = vmatpush.msra.mxu0 %v98
  %366 = vmatpush.msra.mxu0 %v97
  %367 = vmatpush.msra.mxu0 %v96
  %368 = vmatpush.msra.mxu0 %v95
  %369 = vmatpush.msra.mxu0 %v94
  %370 = vmatpush.msra.mxu0 %v93
  %371 = vmatpush.msra.mxu0 %v92
  %372 = vmatmul.f32.gmra.mxu0 %v354
  %v373 = vpop.f32.mrf.mxu0
  %v374 = vadd.f32 %v101, %v373
  %375 = vdwg.mxu0
  %v376 = vmul.f32 %v374, 0.5
  %v377 = vtanh.pop %v376
  %v378 = vmul.f32 %v377, 0.5
  %v379 = vadd.f32 %v378, 0.5
  %v380 = vtanh.pop %v374
  %v381 = vmul.f32 %v379, %v292
  %383 = vrot.lane.b32.xlu0 %v380, 64
  %v384 = vpop.permute.xlu0 %383
  %v386 = vmul.f32 %v379, %v384
  %388 = vrot.lane.b32.xlu0 %v386, 32
  %v389 = vpop.permute.xlu0 %388
  %v391 = vadd.f32 %v381, %v389
  %v392 = vtanh.pop %v391
  %394 = vrot.lane.b32.xlu0 %v392, 64
  %v395 = vpop.permute.xlu0 %394
  %v397 = vmul.f32 %v379, %v395
  %v398 = vsel %vm102, %v346, 0
  %400 = vmatpush.msra.mxu0 0.0
  %401 = vmatpush.msra.mxu0 0.0
  %402 = vmatpush.msra.mxu0 0.0
  %403 = vmatpush.msra.mxu0 0.0
  %404 = vmatpush.msra.mxu0 0.0
  %405 = vmatpush.msra.mxu0 0.0
  %406 = vmatpush.msra.mxu0 0.0
  %407 = vmatpush.msra.mxu0 0.0
  %408 = vmatpush.msra.mxu0 0.0
  %409 = vmatpush.msra.mxu0 0.0
  %410 = vmatpush.msra.mxu0 0.0
  %411 = vmatpush.msra.mxu0 0.0
  %412 = vmatpush.msra.mxu0 %v23
  %413 = vmatpush.msra.mxu0 %v22
  %414 = vmatpush.msra.mxu0 %v21
  %415 = vmatpush.msra.mxu0 %v20
  %416 = vmatmul.f32.gmra.mxu0 %v398
  %v417 = vpop.f32.mrf.mxu0
  %v418 = vadd.f32 0.0, %v417
  %419 = vdwg.mxu0
  %v420 = vadd.f32 %v78, %v418
  %v421 = vmul.f32 %v420, 0.5
  %v422 = vtanh.pop %v421
  %v423 = vmul.f32 %v422, 0.5
  %v424 = vadd.f32 %v423, 0.5
  %v425 = vtanh.pop %v420
  %v426 = vmul.f32 %v424, %v337
  %428 = vrot.lane.b32.xlu0 %v425, 64
  %v429 = vpop.permute.xlu0 %428
  %v431 = vmul.f32 %v424, %v429
  %433 = vrot.lane.b32.xlu0 %v431, 32
  %v434 = vpop.permute.xlu0 %433
  %v436 = vadd.f32 %v426, %v434
  %v437 = vtanh.pop %v436
  %439 = vrot.lane.b32.xlu0 %v437, 64
  %v440 = vpop.permute.xlu0 %439
  %v442 = vmul.f32 %v424, %v440
  %444 = vrot.lane.b32.xlu0 %v442, 32
  %v445 = vpop.permute.xlu0 %444
  %448 = vrot.lane.b32.xlu0 %v397, 64
  %v449 = vpop.permute.xlu0 %448
  %v451 = vsel %vm102, %v445, %v449
  %v453 = vsel %vm154, %v451, 0
  %455 = vmatpush.msra.mxu0 0.0
  %456 = vmatpush.msra.mxu0 0.0
  %457 = vmatpush.msra.mxu0 0.0
  %458 = vmatpush.msra.mxu0 0.0
  %459 = vmatpush.msra.mxu0 0.0
  %460 = vmatpush.msra.mxu0 0.0
  %461 = vmatpush.msra.mxu0 0.0
  %462 = vmatpush.msra.mxu0 0.0
  %463 = vmatpush.msra.mxu0 %v99
  %464 = vmatpush.msra.mxu0 %v98
  %465 = vmatpush.msra.mxu0 %v97
  %466 = vmatpush.msra.mxu0 %v96
  %467 = vmatpush.msra.mxu0 %v95
  %468 = vmatpush.msra.mxu0 %v94
  %469 = vmatpush.msra.mxu0 %v93
  %470 = vmatpush.msra.mxu0 %v92
  %471 = vmatmul.f32.gmra.mxu0 %v453
  %v472 = vpop.f32.mrf.mxu0
  %v473 = vadd.f32 %v101, %v472
  %474 = vdwg.mxu0
  %v475 = vmul.f32 %v473, 0.5
  %v476 = vtanh.pop %v475
  %v477 = vmul.f32 %v476, 0.5
  %v478 = vadd.f32 %v477, 0.5
  %v479 = vtanh.pop %v473
  %v480 = vmul.f32 %v478, %v391
  %482 = vrot.lane.b32.xlu0 %v479, 64
  %v483 = vpop.permute.xlu0 %482
  %v485 = vmul.f32 %v478, %v483
  %487 = vrot.lane.b32.xlu0 %v485, 32
  %v488 = vpop.permute.xlu0 %487
  %v490 = vadd.f32 %v480, %v488
  %v491 = vtanh.pop %v490
  %493 = vrot.lane.b32.xlu0 %v491, 64
  %v494 = vpop.permute.xlu0 %493
  %v496 = vmul.f32 %v478, %v494
  %v497 = vsel %vm102, %v445, 0
  %499 = vmatpush.msra.mxu0 0.0
  %500 = vmatpush.msra.mxu0 0.0
  %501 = vmatpush.msra.mxu0 0.0
  %502 = vmatpush.msra.mxu0 0.0
  %503 = vmatpush.msra.mxu0 0.0
  %504 = vmatpush.msra.mxu0 0.0
  %505 = vmatpush.msra.mxu0 0.0
  %506 = vmatpush.msra.mxu0 0.0
  %507 = vmatpush.msra.mxu0 0.0
  %508 = vmatpush.msra.mxu0 0.0
  %509 = vmatpush.msra.mxu0 0.0
  %510 = vmatpush.msra.mxu0 0.0
  %511 = vmatpush.msra.mxu0 %v23
  %512 = vmatpush.msra.mxu0 %v22
  %513 = vmatpush.msra.mxu0 %v21
  %514 = vmatpush.msra.mxu0 %v20
  %515 = vmatmul.f32.gmra.mxu0 %v497
  %v516 = vpop.f32.mrf.mxu0
  %v517 = vadd.f32 0.0, %v516
  %518 = vdwg.mxu0
  %v519 = vadd.f32 %v81, %v517
  %v520 = vmul.f32 %v519, 0.5
  %v521 = vtanh.pop %v520
  %v522 = vmul.f32 %v521, 0.5
  %v523 = vadd.f32 %v522, 0.5
  %v524 = vtanh.pop %v519
  %v525 = vmul.f32 %v523, %v436
  %527 = vrot.lane.b32.xlu0 %v524, 64
  %v528 = vpop.permute.xlu0 %527
  %v530 = vmul.f32 %v523, %v528
  %532 = vrot.lane.b32.xlu0 %v530, 32
  %v533 = vpop.permute.xlu0 %532
  %v535 = vadd.f32 %v525, %v533
  %v536 = vtanh.pop %v535
  %538 = vrot.lane.b32.xlu0 %v536, 64
  %v539 = vpop.permute.xlu0 %538
  %v541 = vmul.f32 %v523, %v539
  %543 = vrot.lane.b32.xlu0 %v541, 32
  %v544 = vpop.permute.xlu0 %543
  %547 = vrot.lane.b32.xlu0 %v496, 64
  %v548 = vpop.permute.xlu0 %547
  %v550 = vsel %vm102, %v544, %v548
  %v552 = vsel %vm154, %v550, 0
  %554 = vmatpush.msra.mxu0 0.0
  %555 = vmatpush.msra.mxu0 0.0
  %556 = vmatpush.msra.mxu0 0.0
  %557 = vmatpush.msra.mxu0 0.0
  %558 = vmatpush.msra.mxu0 0.0
  %559 = vmatpush.msra.mxu0 0.0
  %560 = vmatpush.msra.mxu0 0.0
  %561 = vmatpush.msra.mxu0 0.0
  %562 = vmatpush.msra.mxu0 %v99
  %563 = vmatpush.msra.mxu0 %v98
  %564 = vmatpush.msra.mxu0 %v97
  %565 = vmatpush.msra.mxu0 %v96
  %566 = vmatpush.msra.mxu0 %v95
  %567 = vmatpush.msra.mxu0 %v94
  %568 = vmatpush.msra.mxu0 %v93
  %569 = vmatpush.msra.mxu0 %v92
  %570 = vmatmul.f32.gmra.mxu0 %v552
  %v571 = vpop.f32.mrf.mxu0
  %v572 = vadd.f32 %v101, %v571
  %573 = vdwg.mxu0
  %v574 = vmul.f32 %v572, 0.5
  %v575 = vtanh.pop %v574
  %v576 = vmul.f32 %v575, 0.5
  %v577 = vadd.f32 %v576, 0.5
  %v578 = vtanh.pop %v572
  %v579 = vmul.f32 %v577, %v490
  %581 = vrot.lane.b32.xlu0 %v578, 64
  %v582 = vpop.permute.xlu0 %581
  %v584 = vmul.f32 %v577, %v582
  %586 = vrot.lane.b32.xlu0 %v584, 32
  %v587 = vpop.permute.xlu0 %586
  %v589 = vadd.f32 %v579, %v587
  %v590 = vtanh.pop %v589
  %592 = vrot.lane.b32.xlu0 %v590, 64
  %v593 = vpop.permute.xlu0 %592
  %v595 = vmul.f32 %v577, %v593
  %v596 = vsel %vm102, %v544, 0
  %598 = vmatpush.msra.mxu0 0.0
  %599 = vmatpush.msra.mxu0 0.0
  %600 = vmatpush.msra.mxu0 0.0
  %601 = vmatpush.msra.mxu0 0.0
  %602 = vmatpush.msra.mxu0 0.0
  %603 = vmatpush.msra.mxu0 0.0
  %604 = vmatpush.msra.mxu0 0.0
  %605 = vmatpush.msra.mxu0 0.0
  %606 = vmatpush.msra.mxu0 0.0
  %607 = vmatpush.msra.mxu0 0.0
  %608 = vmatpush.msra.mxu0 0.0
  %609 = vmatpush.msra.mxu0 0.0
  %610 = vmatpush.msra.mxu0 %v23
  %611 = vmatpush.msra.mxu0 %v22
  %612 = vmatpush.msra.mxu0 %v21
  %613 = vmatpush.msra.mxu0 %v20
  %614 = vmatmul.f32.gmra.mxu0 %v596
  %v615 = vpop.f32.mrf.mxu0
  %v616 = vadd.f32 0.0, %v615
  %617 = vdwg.mxu0
  %v618 = vadd.f32 %v84, %v616
  %v619 = vmul.f32 %v618, 0.5
  %v620 = vtanh.pop %v619
  %v621 = vmul.f32 %v620, 0.5
  %v622 = vadd.f32 %v621, 0.5
  %v623 = vtanh.pop %v618
  %v624 = vmul.f32 %v622, %v535
  %626 = vrot.lane.b32.xlu0 %v623, 64
  %v627 = vpop.permute.xlu0 %626
  %v629 = vmul.f32 %v622, %v627
  %631 = vrot.lane.b32.xlu0 %v629, 32
  %v632 = vpop.permute.xlu0 %631
  %v634 = vadd.f32 %v624, %v632
  %v635 = vtanh.pop %v634
  %637 = vrot.lane.b32.xlu0 %v635, 64
  %v638 = vpop.permute.xlu0 %637
  %v640 = vmul.f32 %v622, %v638
  %642 = vrot.lane.b32.xlu0 %v640, 32
  %v643 = vpop.permute.xlu0 %642
  %646 = vrot.lane.b32.xlu0 %v595, 64
  %v647 = vpop.permute.xlu0 %646
  %v649 = vsel %vm102, %v643, %v647
  %v651 = vsel %vm154, %v649, 0
  %653 = vmatpush.msra.mxu0 0.0
  %654 = vmatpush.msra.mxu0 0.0
  %655 = vmatpush.msra.mxu0 0.0
  %656 = vmatpush.msra.mxu0 0.0
  %657 = vmatpush.msra.mxu0 0.0
  %658 = vmatpush.msra.mxu0 0.0
  %659 = vmatpush.msra.mxu0 0.0
  %660 = vmatpush.msra.mxu0 0.0
  %661 = vmatpush.msra.mxu0 %v99
  %662 = vmatpush.msra.mxu0 %v98
  %663 = vmatpush.msra.mxu0 %v97
  %664 = vmatpush.msra.mxu0 %v96
  %665 = vmatpush.msra.mxu0 %v95
  %666 = vmatpush.msra.mxu0 %v94
  %667 = vmatpush.msra.mxu0 %v93
  %668 = vmatpush.msra.mxu0 %v92
  %669 = vmatmul.f32.gmra.mxu0 %v651
  %v670 = vpop.f32.mrf.mxu0
  %v671 = vadd.f32 %v101, %v670
  %672 = vdwg.mxu0
  %v673 = vmul.f32 %v671, 0.5
  %v674 = vtanh.pop %v673
  %v675 = vmul.f32 %v674, 0.5
  %v676 = vadd.f32 %v675, 0.5
  %v677 = vtanh.pop %v671
  %v678 = vmul.f32 %v676, %v589
  %680 = vrot.lane.b32.xlu0 %v677, 64
  %v681 = vpop.permute.xlu0 %680
  %v683 = vmul.f32 %v676, %v681
  %685 = vrot.lane.b32.xlu0 %v683, 32
  %v686 = vpop.permute.xlu0 %685
  %v688 = vadd.f32 %v678, %v686
  %v689 = vtanh.pop %v688
  %691 = vrot.lane.b32.xlu0 %v689, 64
  %v692 = vpop.permute.xlu0 %691
  %v694 = vmul.f32 %v676, %v692
  %v695 = vsel %vm102, %v643, 0
  %697 = vmatpush.msra.mxu0 0.0
  %698 = vmatpush.msra.mxu0 0.0
  %699 = vmatpush.msra.mxu0 0.0
  %700 = vmatpush.msra.mxu0 0.0
  %701 = vmatpush.msra.mxu0 0.0
  %702 = vmatpush.msra.mxu0 0.0
  %703 = vmatpush.msra.mxu0 0.0
  %704 = vmatpush.msra.mxu0 0.0
  %705 = vmatpush.msra.mxu0 0.0
  %706 = vmatpush.msra.mxu0 0.0
  %707 = vmatpush.msra.mxu0 0.0
  %708 = vmatpush.msra.mxu0 0.0
  %709 = vmatpush.msra.mxu0 %v23
  %710 = vmatpush.msra.mxu0 %v22
  %711 = vmatpush.msra.mxu0 %v21
  %712 = vmatpush.msra.mxu0 %v20
  %713 = vmatmul.f32.gmra.mxu0 %v695
  %v714 = vpop.f32.mrf.mxu0
  %v715 = vadd.f32 0.0, %v714
  %716 = vdwg.mxu0
  %v717 = vadd.f32 %v87, %v715
  %v718 = vmul.f32 %v717, 0.5
  %v719 = vtanh.pop %v718
  %v720 = vmul.f32 %v719, 0.5
  %v721 = vadd.f32 %v720, 0.5
  %v722 = vtanh.pop %v717
  %v723 = vmul.f32 %v721, %v634
  %725 = vrot.lane.b32.xlu0 %v722, 64
  %v726 = vpop.permute.xlu0 %725
  %v728 = vmul.f32 %v721, %v726
  %730 = vrot.lane.b32.xlu0 %v728, 32
  %v731 = vpop.permute.xlu0 %730
  %v733 = vadd.f32 %v723, %v731
  %v734 = vtanh.pop %v733
  %736 = vrot.lane.b32.xlu0 %v734, 64
  %v737 = vpop.permute.xlu0 %736
  %v739 = vmul.f32 %v721, %v737
  %741 = vrot.lane.b32.xlu0 %v739, 32
  %v742 = vpop.permute.xlu0 %741
  %745 = vrot.lane.b32.xlu0 %v694, 64
  %v746 = vpop.permute.xlu0 %745
  %v748 = vsel %vm102, %v742, %v746
  %v750 = vsel %vm154, %v748, 0
  %752 = vmatpush.msra.mxu0 0.0
  %753 = vmatpush.msra.mxu0 0.0
  %754 = vmatpush.msra.mxu0 0.0
  %755 = vmatpush.msra.mxu0 0.0
  %756 = vmatpush.msra.mxu0 0.0
  %757 = vmatpush.msra.mxu0 0.0
  %758 = vmatpush.msra.mxu0 0.0
  %759 = vmatpush.msra.mxu0 0.0
  %760 = vmatpush.msra.mxu0 %v99
  %761 = vmatpush.msra.mxu0 %v98
  %762 = vmatpush.msra.mxu0 %v97
  %763 = vmatpush.msra.mxu0 %v96
  %764 = vmatpush.msra.mxu0 %v95
  %765 = vmatpush.msra.mxu0 %v94
  %766 = vmatpush.msra.mxu0 %v93
  %767 = vmatpush.msra.mxu0 %v92
  %768 = vmatmul.f32.gmra.mxu0 %v750
  %v769 = vpop.f32.mrf.mxu0
  %v770 = vadd.f32 %v101, %v769
  %771 = vdwg.mxu0
  %v772 = vmul.f32 %v770, 0.5
  %v773 = vtanh.pop %v772
  %v774 = vmul.f32 %v773, 0.5
  %v775 = vadd.f32 %v774, 0.5
  %v776 = vtanh.pop %v770
  %v777 = vmul.f32 %v775, %v688
  %779 = vrot.lane.b32.xlu0 %v776, 64
  %v780 = vpop.permute.xlu0 %779
  %v782 = vmul.f32 %v775, %v780
  %784 = vrot.lane.b32.xlu0 %v782, 32
  %v785 = vpop.permute.xlu0 %784
  %v787 = vadd.f32 %v777, %v785
  %v788 = vtanh.pop %v787
  %790 = vrot.lane.b32.xlu0 %v788, 64
  %v791 = vpop.permute.xlu0 %790
  %v793 = vmul.f32 %v775, %v791
  %v794 = vsel %vm102, %v742, 0
  %796 = vmatpush.msra.mxu0 0.0
  %797 = vmatpush.msra.mxu0 0.0
  %798 = vmatpush.msra.mxu0 0.0
  %799 = vmatpush.msra.mxu0 0.0
  %800 = vmatpush.msra.mxu0 0.0
  %801 = vmatpush.msra.mxu0 0.0
  %802 = vmatpush.msra.mxu0 0.0
  %803 = vmatpush.msra.mxu0 0.0
  %804 = vmatpush.msra.mxu0 0.0
  %805 = vmatpush.msra.mxu0 0.0
  %806 = vmatpush.msra.mxu0 0.0
  %807 = vmatpush.msra.mxu0 0.0
  %808 = vmatpush.msra.mxu0 %v23
  %809 = vmatpush.msra.mxu0 %v22
  %810 = vmatpush.msra.mxu0 %v21
  %811 = vmatpush.msra.mxu0 %v20
  %812 = vmatmul.f32.gmra.mxu0 %v794
  %v813 = vpop.f32.mrf.mxu0
  %v814 = vadd.f32 0.0, %v813
  %815 = vdwg.mxu0
  %v816 = vadd.f32 %v90, %v814
  %v817 = vmul.f32 %v816, 0.5
  %v818 = vtanh.pop %v817
  %v819 = vmul.f32 %v818, 0.5
  %v820 = vadd.f32 %v819, 0.5
  %v821 = vtanh.pop %v816
  %v822 = vmul.f32 %v820, %v733
  %824 = vrot.lane.b32.xlu0 %v821, 64
  %v825 = vpop.permute.xlu0 %824
  %v827 = vmul.f32 %v820, %v825
  %829 = vrot.lane.b32.xlu0 %v827, 32
  %v830 = vpop.permute.xlu0 %829
  %v832 = vadd.f32 %v822, %v830
  %v833 = vtanh.pop %v832
  %835 = vrot.lane.b32.xlu0 %v833, 64
  %v836 = vpop.permute.xlu0 %835
  %v838 = vmul.f32 %v820, %v836
  %840 = vrot.lane.b32.xlu0 %v838, 32
  %v841 = vpop.permute.xlu0 %840
  %844 = vrot.lane.b32.xlu0 %v793, 64
  %v845 = vpop.permute.xlu0 %844
  %v847 = vsel %vm102, %v841, %v845
  %v849 = vsel %vm154, %v847, 0
  %851 = vmatpush.msra.mxu0 0.0
  %852 = vmatpush.msra.mxu0 0.0
  %853 = vmatpush.msra.mxu0 0.0
  %854 = vmatpush.msra.mxu0 0.0
  %855 = vmatpush.msra.mxu0 0.0
  %856 = vmatpush.msra.mxu0 0.0
  %857 = vmatpush.msra.mxu0 0.0
  %858 = vmatpush.msra.mxu0 0.0
  %859 = vmatpush.msra.mxu0 %v99
  %860 = vmatpush.msra.mxu0 %v98
  %861 = vmatpush.msra.mxu0 %v97
  %862 = vmatpush.msra.mxu0 %v96
  %863 = vmatpush.msra.mxu0 %v95
  %864 = vmatpush.msra.mxu0 %v94
  %865 = vmatpush.msra.mxu0 %v93
  %866 = vmatpush.msra.mxu0 %v92
  %867 = vmatmul.f32.gmra.mxu0 %v849
  %v868 = vpop.f32.mrf.mxu0
  %v869 = vadd.f32 %v101, %v868
  %870 = vdwg.mxu0
  %v871 = vmul.f32 %v869, 0.5
  %v872 = vtanh.pop %v871
  %v873 = vmul.f32 %v872, 0.5
  %v874 = vadd.f32 %v873, 0.5
  %v875 = vtanh.pop %v869
  %v876 = vmul.f32 %v874, %v787
  %878 = vrot.lane.b32.xlu0 %v875, 64
  %v879 = vpop.permute.xlu0 %878
  %v881 = vmul.f32 %v874, %v879
  %883 = vrot.lane.b32.xlu0 %v881, 32
  %v884 = vpop.permute.xlu0 %883
  %v886 = vadd.f32 %v876, %v884
  %v887 = vtanh.pop %v886
  %889 = vrot.lane.b32.xlu0 %v887, 64
  %v890 = vpop.permute.xlu0 %889
  %v892 = vmul.f32 %v874, %v890
  %v893 = vld [vmem:[%s1 + $0x78] sm:$0xff]
  %v894 = vld [vmem:[%s1 + $0x80] sm:$0xff]
  %v895 = vld [vmem:[%s1 + $0x88] sm:$0xff]
  %v896 = vld [vmem:[%s1 + $0x90] sm:$0xff]
  %v897 = vld [vmem:[%s1 + $0xa0] sm:$0xff]
  %v898 = vld [vmem:[%s1 + $0xa8] sm:$0xff]
  %v899 = vld [vmem:[%s1 + $0xb0] sm:$0xff]
  %v900 = vld [vmem:[%s1 + $0xb8] sm:$0xff]
  %v901 = vld [vmem:[%s1 + $0xc0] sm:$0xff]
  %v902 = vld [vmem:[%s1 + $0xc8] sm:$0xff]
  %v903 = vld [vmem:[%s1 + $0xd0] sm:$0xff]
  %v904 = vld [vmem:[%s1 + $0xd8] sm:$0xff]
  %v905 = vld [vmem:[%s1 + $0xe0] sm:$0xff]
  %v906 = vld [vmem:[%s1 + $0xe8] sm:$0xff]
  %v907 = vld [vmem:[%s1 + $0xf0] sm:$0xff]
  %v908 = vld [vmem:[%s1 + $0xf8] sm:$0xff]
  %v909 = vld [vmem:[%s1 + $0x100] sm:$0xff]
  %v910 = vld [vmem:[%s1 + $0x108] sm:$0xff]
  %v911 = vld [vmem:[%s1 + $0x110] sm:$0xff]
  %v912 = vld [vmem:[%s1 + $0x118] sm:$0xff]
  %v913 = vld [vmem:[%s1 + $0x120] sm:$0x1]
  %915 = vrot.lane.b32.xlu0 %v892, 32
  %v916 = vpop.permute.xlu0 %915
  %v917 = vsel %vm102, %v916, 0
  %919 = vmatpush.msra.mxu0 0.0
  %920 = vmatpush.msra.mxu0 0.0
  %921 = vmatpush.msra.mxu0 0.0
  %922 = vmatpush.msra.mxu0 0.0
  %923 = vmatpush.msra.mxu0 0.0
  %924 = vmatpush.msra.mxu0 0.0
  %925 = vmatpush.msra.mxu0 0.0
  %926 = vmatpush.msra.mxu0 0.0
  %927 = vmatpush.msra.mxu0 0.0
  %928 = vmatpush.msra.mxu0 0.0
  %929 = vmatpush.msra.mxu0 0.0
  %930 = vmatpush.msra.mxu0 0.0
  %931 = vmatpush.msra.mxu0 %v896
  %932 = vmatpush.msra.mxu0 %v895
  %933 = vmatpush.msra.mxu0 %v894
  %934 = vmatpush.msra.mxu0 %v893
  %935 = vmatmul.f32.gmra.mxu0 %v917
  %v936 = vpop.f32.mrf.mxu0
  %v937 = vadd.f32 %v101, %v936
  %938 = vdwg.mxu0
  %v939 = vmax.f32 %v937, 0.0
  %v940 = vperm.slane %v913, 0
  %941 = vmatpush.msra.mxu0 %v912
  %942 = vmatpush.msra.mxu0 %v911
  %943 = vmatpush.msra.mxu0 %v910
  %944 = vmatpush.msra.mxu0 %v909
  %945 = vmatpush.msra.mxu0 %v908
  %946 = vmatpush.msra.mxu0 %v907
  %947 = vmatpush.msra.mxu0 %v906
  %948 = vmatpush.msra.mxu0 %v905
  %949 = vmatpush.msra.mxu0 %v904
  %950 = vmatpush.msra.mxu0 %v903
  %951 = vmatpush.msra.mxu0 %v902
  %952 = vmatpush.msra.mxu0 %v901
  %953 = vmatpush.msra.mxu0 %v900
  %954 = vmatpush.msra.mxu0 %v899
  %955 = vmatpush.msra.mxu0 %v898
  %956 = vmatpush.msra.mxu0 %v897
  %957 = vmatmul.f32.gmra.mxu0 %v939
  %v958 = vpop.f32.mrf.mxu0
  %v959 = vadd.f32 %v940, %v958
  %960 = vdwg.mxu0
  %961 = vst [vmem:[%s2] sm:$0xff] %v959
  // Predicated region
  $region10: #{lstm_model_forward.1} parent=0 // pred_check
    _
  $region11: #{lstm_model_forward.1} parent=0 // pred_check_branch
    %963 = sbr.rel (0) target = $region13
  $region12: #{lstm_model_forward.1} parent=0 // pred_region
    _
  $region13: #{lstm_model_forward.1} parent=0 // pred_fallthru
    _
  // Predicated region
  $region14: #{lstm_model_forward.1} parent=0 // pred_check
    _
  $region15: #{lstm_model_forward.1} parent=0 // pred_check_branch
    %965 = sbr.rel (0) target = $region17
  $region16: #{lstm_model_forward.1} parent=0 // pred_region
    _
  $region17: #{lstm_model_forward.1} parent=0 // pred_fallthru
    _

</llo_original>
